<compile_context>
chip_gen: v5e
topology: v5e:2x2
jax: 0.10.0
libtpu: 0.0.40
codegen_flags: <defaults>
</compile_context>

<pallas_src>
import jax
import jax.numpy as jnp
from jax.experimental import pallas as pl
from jax.experimental.pallas import tpu as pltpu


# --------------------------------------------------------------------------- #
# Kernel
# --------------------------------------------------------------------------- #
def _vae_kernel(x_ref, w1_ref, b1_ref, wh_ref, bh_ref, eps_ref, z_ref):
    """Fused encoder (Linear -> ReLU -> packed heads) + reparameterization.

    The packed head weight places mu at lanes [0, latent) and log_sigma at
    lanes [half, half + latent) of one lane-dense slab; a single static lane
    roll of `half` aligns log_sigma with mu so the whole FMA
        z = mu + exp(log_sigma) * eps
    runs on one 128*k-lane slab and the store is unmasked/lane-dense.
    Lanes >= latent hold junk and are sliced off by the host wrapper.
    """
    half = wh_ref.shape[1] // 2
    # In-kernel f32 -> bf16 cast of x (no separate host-side cast op).
    x = x_ref[...].astype(w1_ref.dtype)
    h = jnp.dot(x, w1_ref[...], preferred_element_type=jnp.float32)
    h = jnp.maximum(h + b1_ref[...], 0.0)                         # bias + ReLU (f32, VPU)
    heads = jnp.dot(h.astype(wh_ref.dtype), wh_ref[...],
                    preferred_element_type=jnp.float32) + bh_ref[...]
    # Static lane rotation (RoPE-style half-slab roll) aligns log_sigma with mu.
    log_sigma = jnp.roll(heads, shift=half, axis=-1)
    eps = eps_ref[...].astype(jnp.float32)
    z_ref[...] = heads + jnp.exp(log_sigma) * eps


# --------------------------------------------------------------------------- #
# Parameter packing & wrapper
# --------------------------------------------------------------------------- #
def init_params(key, d_in, hidden, latent):
    """Deterministic synthetic encoder: Linear -> ReLU -> {mu, log_sigma}."""
    k1, k2, k3 = jax.random.split(key, 3)
    w1 = jax.random.normal(k1, (d_in, hidden), jnp.float32) / jnp.sqrt(d_in)
    b1 = jnp.zeros((1, hidden), jnp.float32)
    wmu = jax.random.normal(k2, (hidden, latent), jnp.float32) / jnp.sqrt(hidden)
    bmu = jnp.zeros((1, latent), jnp.float32)
    wls = 0.1 * jax.random.normal(k3, (hidden, latent), jnp.float32) / jnp.sqrt(hidden)
    bls = jnp.zeros((1, latent), jnp.float32)
    return (w1, b1, wmu, bmu, wls, bls)


def pack_encoder_params(raw_params, latent):
    """Pack encoder params for the kernel.

    Both heads share one lane-dense slab of width 2*half:
      * half = 64 when latent <= 64 (both heads fit a single 128-lane vreg),
        otherwise latent rounded up to a multiple of 128.
      * mu occupies lanes [0, latent), log_sigma lanes [half, half + latent),
        zero padding elsewhere; the kernel realigns them with one lane roll.
    Weights are bf16 (MXU operands); biases stay f32.
    """
    w1, b1, wmu, bmu, wls, bls = raw_params
    hidden = w1.shape[1]
    half = 64 if latent <= 64 else ((latent + 127) // 128) * 128
    slab = 2 * half
    wh = jnp.zeros((hidden, slab), jnp.float32)
    wh = wh.at[:, :latent].set(wmu).at[:, half:half + latent].set(wls)
    bh = jnp.zeros((1, slab), jnp.float32)
    bh = bh.at[:, :latent].set(bmu).at[:, half:half + latent].set(bls)
    return dict(w1=w1.astype(jnp.bfloat16), b1=b1,
                wh=wh.astype(jnp.bfloat16), bh=bh,
                latent=latent, slab=slab)


def vae_transform(x, packed, eps, *, block_b=None):
    """Fused encoder + reparameterization:  z = mu + exp(log_sigma) * eps.

    x:      [B, d_in] float32 (flattened input data)
    packed: output of pack_encoder_params
    eps:    [B, latent] float32 standard-normal noise (streamed as bf16)
    Returns z: [B, latent] float32.
    """
    w1, b1, wh, bh = packed["w1"], packed["b1"], packed["wh"], packed["bh"]
    latent, slab = packed["latent"], packed["slab"]
    B, d_in = x.shape
    hidden = w1.shape[1]

    if block_b is None:
        # Largest batch tile that divides B: fewer grid steps amortizes the
        # fixed per-step overhead and pipeline prologue. (On v7x, keeping an
        # even number of tiles shards work across both TensorCores.)
        block_b = next((c for c in (1024, 512, 256, 128) if B % c == 0),
                       B if B <= 256 else 128)
    n_tiles = pl.cdiv(B, block_b)
    b_pad = n_tiles * block_b

    # eps as a bf16 lane-dense slab: real noise in lanes [0, latent), zeros
    # elsewhere (padding lanes multiply exp(<finite>) * 0 = 0 in-kernel).
    eps_slab = jnp.zeros((b_pad, slab), jnp.bfloat16)
    eps_slab = eps_slab.at[:B, :latent].set(eps.astype(jnp.bfloat16))
    if b_pad != B:
        x = jnp.pad(x, ((0, b_pad - B), (0, 0)))

    # Weights: constant index maps -> VMEM-resident across the grid.
    const2d = lambda a: pl.BlockSpec(a.shape, lambda i: (0, 0))
    # Row-streamed tensors: tiled over the batch axis (double-buffered).
    row = lambda cols: pl.BlockSpec((block_b, cols), lambda i: (i, 0))

    # Explicit scoped-VMEM limit: resident weights + 2x double-buffered tiles,
    # with generous margin, capped at the smallest per-TC physical VMEM (v7x).
    needed = (w1.size * 2 + wh.size * 2 + (b1.size + bh.size) * 4
              + 2 * block_b * (d_in * 4 + slab * 2 + slab * 4))
    vmem_limit = int(min(max(4 * needed, 32 << 20), 64 << 20))

    cost = pl.CostEstimate(
        flops=2 * b_pad * (d_in * hidden + hidden * slab),
        transcendentals=b_pad * slab,
        bytes_accessed=int(x.size * 4 + eps_slab.size * 2 + w1.size * 2
                           + wh.size * 2 + (b1.size + bh.size) * 4
                           + b_pad * slab * 4))

    z_slab = pl.pallas_call(
        _vae_kernel,
        out_shape=jax.ShapeDtypeStruct((b_pad, slab), jnp.float32),
        grid=(n_tiles,),
        in_specs=[row(d_in), const2d(w1), const2d(b1), const2d(wh), const2d(bh),
                  row(slab)],
        out_specs=row(slab),
        compiler_params=pltpu.CompilerParams(
            dimension_semantics=("parallel",),     # batch axis -> v7x 2-TC sharding
            vmem_limit_bytes=vmem_limit),
        cost_estimate=cost,
    )(x, w1, b1, wh, bh, eps_slab)
    return z_slab[:B, :latent]


# --------------------------------------------------------------------------- #
# Demo / correctness check
# --------------------------------------------------------------------------- #
if __name__ == "__main__":
    B, D_IN, HIDDEN, LATENT = 256, 128, 128, 32

    key = jax.random.PRNGKey(0)
    k_x, k_p, k_eps = jax.random.split(key, 3)

    x = jax.random.normal(k_x, (B, D_IN), jnp.float32)
    raw = init_params(k_p, D_IN, HIDDEN, LATENT)
    packed = pack_encoder_params(raw, LATENT)
    eps = jax.random.normal(k_eps, (B, LATENT), jnp.float32)

    z = vae_transform(x, packed, eps)
    jax.block_until_ready(z)
    assert z.shape == (B, LATENT)
    assert bool(jnp.all(jnp.isfinite(z)))

    # Reference with the same precision strategy as the kernel
    # (bf16 matmul operands, f32 accumulation, bf16-rounded eps stream).
    w1, b1, wmu, bmu, wls, bls = raw
    xb = x.astype(jnp.bfloat16)
    h_ref = jnp.maximum(
        jnp.dot(xb, w1.astype(jnp.bfloat16), preferred_element_type=jnp.float32) + b1,
        0.0)
    hb = h_ref.astype(jnp.bfloat16)
    mu_ref = jnp.dot(hb, wmu.astype(jnp.bfloat16), preferred_element_type=jnp.float32) + bmu
    ls_ref = jnp.dot(hb, wls.astype(jnp.bfloat16), preferred_element_type=jnp.float32) + bls
    z_ref = mu_ref + jnp.exp(ls_ref) * eps.astype(jnp.bfloat16).astype(jnp.float32)

    assert jnp.allclose(z, z_ref, atol=1e-2, rtol=1e-2), "mismatch vs reference"

    print("KERNEL_OK")
</pallas_src>

<mosaic_0001>
module attributes {stable_mosaic.version = 11 : i64} {
  func.func @_vae_kernel(%arg0: i32, %arg1: memref<256x128xf32, #tpu.memory_space<vmem>>, %arg2: memref<128x128xbf16, #tpu.memory_space<vmem>>, %arg3: memref<1x128xf32, #tpu.memory_space<vmem>>, %arg4: memref<128x128xbf16, #tpu.memory_space<vmem>>, %arg5: memref<1x128xf32, #tpu.memory_space<vmem>>, %arg6: memref<256x128xbf16, #tpu.memory_space<vmem>>, %arg7: memref<256x128xf32, #tpu.memory_space<vmem>>) attributes {dimension_semantics = [#tpu.dimension_semantics<parallel>], iteration_bounds = array<i64: 1>, scalar_prefetch = 0 : i64, scratch_operands = 0 : i64, tpu.core_type = #tpu.core_type<tc>, window_params = [{transform_indices = @transform_0, window_bounds = array<i64: 256, 128>}, {pipeline_mode = #tpu.pipeline_mode<synchronous>, transform_indices = @transform_1, window_bounds = array<i64: 128, 128>}, {pipeline_mode = #tpu.pipeline_mode<synchronous>, transform_indices = @transform_2, window_bounds = array<i64: 1, 128>}, {pipeline_mode = #tpu.pipeline_mode<synchronous>, transform_indices = @transform_3, window_bounds = array<i64: 128, 128>}, {pipeline_mode = #tpu.pipeline_mode<synchronous>, transform_indices = @transform_4, window_bounds = array<i64: 1, 128>}, {transform_indices = @transform_5, window_bounds = array<i64: 256, 128>}, {transform_indices = @transform_6, window_bounds = array<i64: 256, 128>}]} {
    %c0 = arith.constant 0 : index
    %c0_0 = arith.constant 0 : index
    %0 = vector.load %arg1[%c0, %c0_0] : memref<256x128xf32, #tpu.memory_space<vmem>>, vector<256x128xf32>
    %1 = arith.truncf %0 : vector<256x128xf32> to vector<256x128xbf16>
    %c0_1 = arith.constant 0 : index
    %c0_2 = arith.constant 0 : index
    %2 = vector.load %arg2[%c0_1, %c0_2] : memref<128x128xbf16, #tpu.memory_space<vmem>>, vector<128x128xbf16>
    %cst = arith.constant dense<0.000000e+00> : vector<256x128xf32>
    %3 = tpu.matmul %1, %2, %cst {dimension_numbers = #tpu.dot_dimension_numbers<[1], [0], [0], [1], [0, 0, 1, 1], [], []>} : vector<256x128xbf16>, vector<128x128xbf16>, vector<256x128xf32> -> vector<256x128xf32>
    %c0_3 = arith.constant 0 : index
    %c0_4 = arith.constant 0 : index
    %4 = vector.load %arg3[%c0_3, %c0_4] : memref<1x128xf32, #tpu.memory_space<vmem>>, vector<1x128xf32>
    %5 = vector.broadcast %4 : vector<1x128xf32> to vector<256x128xf32>
    %6 = arith.addf %3, %5 : vector<256x128xf32>
    %cst_5 = arith.constant 0.000000e+00 : f32
    %7 = vector.broadcast %cst_5 : f32 to vector<256x128xf32>
    %8 = arith.maximumf %6, %7 : vector<256x128xf32>
    %9 = arith.truncf %8 : vector<256x128xf32> to vector<256x128xbf16>
    %c0_6 = arith.constant 0 : index
    %c0_7 = arith.constant 0 : index
    %10 = vector.load %arg4[%c0_6, %c0_7] : memref<128x128xbf16, #tpu.memory_space<vmem>>, vector<128x128xbf16>
    %cst_8 = arith.constant dense<0.000000e+00> : vector<256x128xf32>
    %11 = tpu.matmul %9, %10, %cst_8 {dimension_numbers = #tpu.dot_dimension_numbers<[1], [0], [0], [1], [0, 0, 1, 1], [], []>} : vector<256x128xbf16>, vector<128x128xbf16>, vector<256x128xf32> -> vector<256x128xf32>
    %c0_9 = arith.constant 0 : index
    %c0_10 = arith.constant 0 : index
    %12 = vector.load %arg5[%c0_9, %c0_10] : memref<1x128xf32, #tpu.memory_space<vmem>>, vector<1x128xf32>
    %13 = vector.broadcast %12 : vector<1x128xf32> to vector<256x128xf32>
    %14 = arith.addf %11, %13 : vector<256x128xf32>
    %15 = vector.extract_strided_slice %14 {offsets = [0, 64], sizes = [256, 64], strides = [1, 1]} : vector<256x128xf32> to vector<256x64xf32>
    %16 = vector.extract_strided_slice %14 {offsets = [0, 0], sizes = [256, 64], strides = [1, 1]} : vector<256x128xf32> to vector<256x64xf32>
    %17 = tpu.concatenate %15, %16 in 1 : vector<256x64xf32>, vector<256x64xf32> -> vector<256x128xf32>
    %c0_11 = arith.constant 0 : index
    %c0_12 = arith.constant 0 : index
    %18 = vector.load %arg6[%c0_11, %c0_12] : memref<256x128xbf16, #tpu.memory_space<vmem>>, vector<256x128xbf16>
    %19 = arith.extf %18 : vector<256x128xbf16> to vector<256x128xf32>
    %20 = math.exp %17 : vector<256x128xf32>
    %21 = arith.mulf %20, %19 : vector<256x128xf32>
    %22 = arith.addf %14, %21 : vector<256x128xf32>
    %c0_13 = arith.constant 0 : index
    %c0_14 = arith.constant 0 : index
    %23 = vector.load %arg7[%c0_13, %c0_14] : memref<256x128xf32, #tpu.memory_space<vmem>>, vector<256x128xf32>
    tpu.vector_store %arg7[%c0_13, %c0_14], %22 {strides = array<i32>} : memref<256x128xf32, #tpu.memory_space<vmem>>, vector<256x128xf32>,
    return
  }
  func.func @transform_0(%arg0: i32) -> (i32, i32) {
    %c0_i32 = arith.constant 0 : i32
    %c0_i32_0 = arith.constant 0 : i32
    return %arg0, %c0_i32 : i32, i32
  }
  func.func @transform_1(%arg0: i32) -> (i32, i32) {
    %c0_i32 = arith.constant 0 : i32
    %c0_i32_0 = arith.constant 0 : i32
    %c0_i32_1 = arith.constant 0 : i32
    return %c0_i32, %c0_i32_0 : i32, i32
  }
  func.func @transform_2(%arg0: i32) -> (i32, i32) {
    %c0_i32 = arith.constant 0 : i32
    %c0_i32_0 = arith.constant 0 : i32
    %c0_i32_1 = arith.constant 0 : i32
    return %c0_i32, %c0_i32_0 : i32, i32
  }
  func.func @transform_3(%arg0: i32) -> (i32, i32) {
    %c0_i32 = arith.constant 0 : i32
    %c0_i32_0 = arith.constant 0 : i32
    %c0_i32_1 = arith.constant 0 : i32
    return %c0_i32, %c0_i32_0 : i32, i32
  }
  func.func @transform_4(%arg0: i32) -> (i32, i32) {
    %c0_i32 = arith.constant 0 : i32
    %c0_i32_0 = arith.constant 0 : i32
    %c0_i32_1 = arith.constant 0 : i32
    return %c0_i32, %c0_i32_0 : i32, i32
  }
  func.func @transform_5(%arg0: i32) -> (i32, i32) {
    %c0_i32 = arith.constant 0 : i32
    %c0_i32_0 = arith.constant 0 : i32
    return %arg0, %c0_i32 : i32, i32
  }
  func.func @transform_6(%arg0: i32) -> (i32, i32) {
    %c0_i32 = arith.constant 0 : i32
    %c0_i32_0 = arith.constant 0 : i32
    return %arg0, %c0_i32 : i32, i32
  }
}

</mosaic_0001>

<llo_original>
// kernel: tpu_custom_call.1
$region0: #{tpu_custom_call.1}
  #allocation0 [shape = 'u32[]', space=smem, size = 0x4, offset = 0x4, fixed_abs, tag = 'smem constant byte address 0x4 - core index']
  #allocation1 [shape = 'u32[72,128]{1,0:T(1,128)}', space=vmem, size = 0x9000, scoped, tag = 'internal scratch']
  %s0 = inlined_call_operand.hbm [shape: f32[256,128], index: 0, kind: input, shape index: {}]
  %s1 = inlined_call_operand.hbm [shape: bf16[128,128], index: 1, kind: input, shape index: {}]
  %s2 = inlined_call_operand.vmem [shape: f32[1,128], index: 2, kind: input, shape index: {}]
  %s3 = inlined_call_operand.hbm [shape: bf16[128,128], index: 3, kind: input, shape index: {}]
  %s4 = inlined_call_operand.vmem [shape: f32[1,128], index: 4, kind: input, shape index: {}]
  %s5 = inlined_call_operand.hbm [shape: bf16[256,128], index: 5, kind: input, shape index: {}]
  %s6 = inlined_call_operand.hbm [shape: f32[256,128], index: 6, kind: output, shape index: {}]
  %s7 = sld [smem:[#allocation0]]
  $region50: #{tpu_custom_call.1} parent=0
    _
  %s9 = ssub.s32 1, %s7
  %s10 = scalar_select 0, %s9, %s7
  $region1: #{tpu_custom_call.1} parent=0
    #allocation2 [shape = 'u8[131072]{0}', space=vmem, size = 0x20000, scoped, tag = 'input window, operand 0, single buffered']
    #allocation3 [shape = 's32[1]{0}', space=sflag, size = 0x4, scoped, tag = 'scoped memory for tpu_custom_call.1']
    #allocation4 [shape = 's32[1]{0}', space=sflag, size = 0x4, scoped, tag = 'scoped memory for tpu_custom_call.1']
    #allocation5 [shape = 'u8[32768]{0}', space=vmem, size = 0x8000, scoped, tag = 'input window, operand 1, single buffered']
    #allocation6 [shape = 's32[1]{0}', space=sflag, size = 0x4, scoped, tag = 'scoped memory for tpu_custom_call.1']
    #allocation7 [shape = 'u8[32768]{0}', space=vmem, size = 0x8000, scoped, tag = 'input window, operand 3, single buffered']
    #allocation8 [shape = 'u8[65536]{0}', space=vmem, size = 0x10000, scoped, tag = 'input window, operand 5, single buffered']
    #allocation9 [shape = 's32[1]{0}', space=sflag, size = 0x4, scoped, tag = 'scoped memory for tpu_custom_call.1']
    #allocation10 [shape = 'u8[131072]{0}', space=vmem, size = 0x20000, scoped, tag = 'output window, operand 0, single buffered']
    %11 = vsyncpa [#allocation3], 0
    %12 = vsyncpa [#allocation6], 0
    %13 = vsyncpa [#allocation9], 0
    %14 = vsyncpa [#allocation4], 0
    // Predicated region
    $region2: #{tpu_custom_call.1} parent=1 // pred_check
      _
    $region3: #{tpu_custom_call.1} parent=1 // pred_check_branch
      %16 = sbr.rel (0) target = $region5
    $region4: #{tpu_custom_call.1} parent=1 // pred_region
      %18 = vsyncadd [#allocation3], 0
      %s19 = sshll.u32 %s0, 4
      %s20 = int_to_ptr.hbm [resolvable:$true] %s19
      %s21 = sshll.u32 [#allocation2], 4
      %s22 = int_to_ptr.vmem [resolvable:$true] %s21
      %27 = dma.hbm_to_vmem [thread:$0]  %s20, 4096, %s22, [#allocation3], 128, 128, 8
    $region5: #{tpu_custom_call.1} parent=1 // pred_fallthru
      _
    // Predicated region
    $region6: #{tpu_custom_call.1} parent=1 // pred_check
      _
    $region7: #{tpu_custom_call.1} parent=1 // pred_check_branch
      %29 = sbr.rel (0) target = $region9
    $region8: #{tpu_custom_call.1} parent=1 // pred_region
      %31 = vsyncadd [#allocation6], 0
      %s32 = sshll.u32 %s1, 4
      %s33 = int_to_ptr.hbm [resolvable:$true] %s32
      %s34 = sshll.u32 [#allocation5], 4
      %s35 = int_to_ptr.vmem [resolvable:$true] %s34
      %40 = dma.hbm_to_vmem [thread:$0]  %s33, 1024, %s35, [#allocation6], 64, 64, 4
    $region9: #{tpu_custom_call.1} parent=1 // pred_fallthru
      _
    // Predicated region
    $region10: #{tpu_custom_call.1} parent=1 // pred_check
      _
    $region11: #{tpu_custom_call.1} parent=1 // pred_check_branch
      %42 = sbr.rel (0) target = $region13
    $region12: #{tpu_custom_call.1} parent=1 // pred_region
      _
    $region13: #{tpu_custom_call.1} parent=1 // pred_fallthru
      _
    // Predicated region
    $region14: #{tpu_custom_call.1} parent=1 // pred_check
      _
    $region15: #{tpu_custom_call.1} parent=1 // pred_check_branch
      %44 = sbr.rel (0) target = $region17
    $region16: #{tpu_custom_call.1} parent=1 // pred_region
      %46 = vsyncadd [#allocation6], 0
      %s47 = sshll.u32 %s3, 4
      %s48 = int_to_ptr.hbm [resolvable:$true] %s47
      %s49 = sshll.u32 [#allocation7], 4
      %s50 = int_to_ptr.vmem [resolvable:$true] %s49
      %55 = dma.hbm_to_vmem [thread:$0]  %s48, 1024, %s50, [#allocation6], 64, 64, 4
    $region17: #{tpu_custom_call.1} parent=1 // pred_fallthru
      _
    // Predicated region
    $region18: #{tpu_custom_call.1} parent=1 // pred_check
      _
    $region19: #{tpu_custom_call.1} parent=1 // pred_check_branch
      %57 = sbr.rel (0) target = $region21
    $region20: #{tpu_custom_call.1} parent=1 // pred_region
      _
    $region21: #{tpu_custom_call.1} parent=1 // pred_fallthru
      _
    // Predicated region
    $region22: #{tpu_custom_call.1} parent=1 // pred_check
      _
    $region23: #{tpu_custom_call.1} parent=1 // pred_check_branch
      %59 = sbr.rel (0) target = $region25
    $region24: #{tpu_custom_call.1} parent=1 // pred_region
      %61 = vsyncadd [#allocation9], 0
      %s62 = sshll.u32 %s5, 4
      %s63 = int_to_ptr.hbm [resolvable:$true] %s62
      %s64 = sshll.u32 [#allocation8], 4
      %s65 = int_to_ptr.vmem [resolvable:$true] %s64
      %70 = dma.hbm_to_vmem [thread:$0]  %s63, 2048, %s65, [#allocation9], 64, 64, 4
    $region25: #{tpu_custom_call.1} parent=1 // pred_fallthru
      _
    // Predicated region
    $region26: #{tpu_custom_call.1} parent=1 // pred_check
      _
    $region27: #{tpu_custom_call.1} parent=1 // pred_check_branch
      %72 = sbr.rel (0) target = $region29
    $region28: #{tpu_custom_call.1} parent=1 // pred_region
      %74 = dma.done [#allocation3], 4096
    $region29: #{tpu_custom_call.1} parent=1 // pred_fallthru
      _
    // Predicated region
    $region30: #{tpu_custom_call.1} parent=1 // pred_check
      _
    $region31: #{tpu_custom_call.1} parent=1 // pred_check_branch
      %76 = sbr.rel (0) target = $region33
    $region32: #{tpu_custom_call.1} parent=1 // pred_region
      %78 = dma.done [#allocation6], 1024
    $region33: #{tpu_custom_call.1} parent=1 // pred_fallthru
      _
    // Predicated region
    $region34: #{tpu_custom_call.1} parent=1 // pred_check
      _
    $region35: #{tpu_custom_call.1} parent=1 // pred_check_branch
      %80 = sbr.rel (0) target = $region37
    $region36: #{tpu_custom_call.1} parent=1 // pred_region
      %82 = dma.done [#allocation6], 1024
    $region37: #{tpu_custom_call.1} parent=1 // pred_fallthru
      _
    // Predicated region
    $region38: #{tpu_custom_call.1} parent=1 // pred_check
      _
    $region39: #{tpu_custom_call.1} parent=1 // pred_check_branch
      %84 = sbr.rel (0) target = $region41
    $region40: #{tpu_custom_call.1} parent=1 // pred_region
      %86 = dma.done [#allocation9], 2048
    $region41: #{tpu_custom_call.1} parent=1 // pred_fallthru
      _
    %v87 = vld [vmem:[#allocation2] sm:$0xff]
    %v88 = vld [vmem:[#allocation2 + $0x8] sm:$0xff]
    %v89 = vld [vmem:[#allocation2 + $0x10] sm:$0xff]
    %v90 = vld [vmem:[#allocation2 + $0x18] sm:$0xff]
    %v91 = vld [vmem:[#allocation2 + $0x20] sm:$0xff]
    %v92 = vld [vmem:[#allocation2 + $0x28] sm:$0xff]
    %v93 = vld [vmem:[#allocation2 + $0x30] sm:$0xff]
    %v94 = vld [vmem:[#allocation2 + $0x38] sm:$0xff]
    %v95 = vld [vmem:[#allocation2 + $0x40] sm:$0xff]
    %v96 = vld [vmem:[#allocation2 + $0x48] sm:$0xff]
    %v97 = vld [vmem:[#allocation2 + $0x50] sm:$0xff]
    %v98 = vld [vmem:[#allocation2 + $0x58] sm:$0xff]
    %v99 = vld [vmem:[#allocation2 + $0x60] sm:$0xff]
    %v100 = vld [vmem:[#allocation2 + $0x68] sm:$0xff]
    %v101 = vld [vmem:[#allocation2 + $0x70] sm:$0xff]
    %v102 = vld [vmem:[#allocation2 + $0x78] sm:$0xff]
    %v103 = vld [vmem:[#allocation2 + $0x80] sm:$0xff]
    %v104 = vld [vmem:[#allocation2 + $0x88] sm:$0xff]
    %v105 = vld [vmem:[#allocation2 + $0x90] sm:$0xff]
    %v106 = vld [vmem:[#allocation2 + $0x98] sm:$0xff]
    %v107 = vld [vmem:[#allocation2 + $0xa0] sm:$0xff]
    %v108 = vld [vmem:[#allocation2 + $0xa8] sm:$0xff]
    %v109 = vld [vmem:[#allocation2 + $0xb0] sm:$0xff]
    %v110 = vld [vmem:[#allocation2 + $0xb8] sm:$0xff]
    %v111 = vld [vmem:[#allocation2 + $0xc0] sm:$0xff]
    %v112 = vld [vmem:[#allocation2 + $0xc8] sm:$0xff]
    %v113 = vld [vmem:[#allocation2 + $0xd0] sm:$0xff]
    %v114 = vld [vmem:[#allocation2 + $0xd8] sm:$0xff]
    %v115 = vld [vmem:[#allocation2 + $0xe0] sm:$0xff]
    %v116 = vld [vmem:[#allocation2 + $0xe8] sm:$0xff]
    %v117 = vld [vmem:[#allocation2 + $0xf0] sm:$0xff]
    %v118 = vld [vmem:[#allocation2 + $0xf8] sm:$0xff]
    %v119 = vpack.c.bf16 %v88, %v87
    %v120 = vpack.c.bf16 %v90, %v89
    %v121 = vpack.c.bf16 %v92, %v91
    %v122 = vpack.c.bf16 %v94, %v93
    %v123 = vpack.c.bf16 %v96, %v95
    %v124 = vpack.c.bf16 %v98, %v97
    %v125 = vpack.c.bf16 %v100, %v99
    %v126 = vpack.c.bf16 %v102, %v101
    %v127 = vpack.c.bf16 %v104, %v103
    %v128 = vpack.c.bf16 %v106, %v105
    %v129 = vpack.c.bf16 %v108, %v107
    %v130 = vpack.c.bf16 %v110, %v109
    %v131 = vpack.c.bf16 %v112, %v111
    %v132 = vpack.c.bf16 %v114, %v113
    %v133 = vpack.c.bf16 %v116, %v115
    %v134 = vpack.c.bf16 %v118, %v117
    %v135 = vld [vmem:[#allocation5] sm:$0xf]
    %v136 = vld [vmem:[#allocation5 + $0x4] sm:$0xf]
    %v137 = vld [vmem:[#allocation5 + $0x8] sm:$0xf]
    %v138 = vld [vmem:[#allocation5 + $0xc] sm:$0xf]
    %v139 = vld [vmem:[#allocation5 + $0x10] sm:$0xf]
    %v140 = vld [vmem:[#allocation5 + $0x14] sm:$0xf]
    %v141 = vld [vmem:[#allocation5 + $0x18] sm:$0xf]
    %v142 = vld [vmem:[#allocation5 + $0x1c] sm:$0xf]
    %v143 = vld [vmem:[#allocation5 + $0x20] sm:$0xf]
    %v144 = vld [vmem:[#allocation5 + $0x24] sm:$0xf]
    %v145 = vld [vmem:[#allocation5 + $0x28] sm:$0xf]
    %v146 = vld [vmem:[#allocation5 + $0x2c] sm:$0xf]
    %v147 = vld [vmem:[#allocation5 + $0x30] sm:$0xf]
    %v148 = vld [vmem:[#allocation5 + $0x34] sm:$0xf]
    %v149 = vld [vmem:[#allocation5 + $0x38] sm:$0xf]
    %v150 = vld [vmem:[#allocation5 + $0x3c] sm:$0xf]
    %v151 = vld [vmem:[%s2] sm:$0x1]
    %v153 = vperm.slane %v151, 0
    %v171 = vunpack.c.l.b16 %v135
    %v172 = vunpack.c.l.b16 %v136
    %v173 = vunpack.c.l.b16 %v137
    %v174 = vunpack.c.l.b16 %v138
    %v175 = vunpack.c.l.b16 %v139
    %v176 = vunpack.c.l.b16 %v140
    %v177 = vunpack.c.l.b16 %v141
    %v178 = vunpack.c.l.b16 %v142
    %v179 = vunpack.c.l.b16 %v143
    %v180 = vunpack.c.l.b16 %v144
    %v181 = vunpack.c.l.b16 %v145
    %v182 = vunpack.c.l.b16 %v146
    %v183 = vunpack.c.l.b16 %v147
    %v184 = vunpack.c.l.b16 %v148
    %v185 = vunpack.c.l.b16 %v149
    %v186 = vunpack.c.l.b16 %v150
    %v187 = vpack.c.b16 %v172, %v171
    %v188 = vpack.c.b16 %v174, %v173
    %v189 = vpack.c.b16 %v176, %v175
    %v190 = vpack.c.b16 %v178, %v177
    %v191 = vpack.c.b16 %v180, %v179
    %v192 = vpack.c.b16 %v182, %v181
    %v193 = vpack.c.b16 %v184, %v183
    %v194 = vpack.c.b16 %v186, %v185
    %203 = vmatpush.bf16.msra.mxu0 %v194
    %204 = vmatpush.bf16.msra.mxu0 %v193
    %205 = vmatpush.bf16.msra.mxu0 %v192
    %206 = vmatpush.bf16.msra.mxu0 %v191
    %207 = vmatpush.bf16.msra.mxu0 %v190
    %208 = vmatpush.bf16.msra.mxu0 %v189
    %209 = vmatpush.bf16.msra.mxu0 %v188
    %210 = vmatpush.bf16.msra.mxu0 %v187
    %211 = vmatmul.bf16.gmra.mxu0 %v119
    %v212 = vpop.f32.mrf.mxu0
    %v213 = vadd.f32 %v153, %v212
    %v214 = vpop.f32.mrf.mxu0
    %v215 = vadd.f32 %v153, %v214
    %216 = vmatmul.bf16.gmra.mxu0 %v120
    %v217 = vpop.f32.mrf.mxu0
    %v218 = vadd.f32 %v153, %v217
    %v219 = vpop.f32.mrf.mxu0
    %v220 = vadd.f32 %v153, %v219
    %221 = vmatmul.bf16.gmra.mxu0 %v121
    %v222 = vpop.f32.mrf.mxu0
    %v223 = vadd.f32 %v153, %v222
    %v224 = vpop.f32.mrf.mxu0
    %v225 = vadd.f32 %v153, %v224
    %226 = vmatmul.bf16.gmra.mxu0 %v122
    %v227 = vpop.f32.mrf.mxu0
    %v228 = vadd.f32 %v153, %v227
    %v229 = vpop.f32.mrf.mxu0
    %v230 = vadd.f32 %v153, %v229
    %231 = vmatmul.bf16.gmra.mxu0 %v123
    %v232 = vpop.f32.mrf.mxu0
    %v233 = vadd.f32 %v153, %v232
    %v234 = vpop.f32.mrf.mxu0
    %v235 = vadd.f32 %v153, %v234
    %236 = vmatmul.bf16.gmra.mxu0 %v124
    %v237 = vpop.f32.mrf.mxu0
    %v238 = vadd.f32 %v153, %v237
    %v239 = vpop.f32.mrf.mxu0
    %v240 = vadd.f32 %v153, %v239
    %241 = vmatmul.bf16.gmra.mxu0 %v125
    %v242 = vpop.f32.mrf.mxu0
    %v243 = vadd.f32 %v153, %v242
    %v244 = vpop.f32.mrf.mxu0
    %v245 = vadd.f32 %v153, %v244
    %246 = vmatmul.bf16.gmra.mxu0 %v126
    %v247 = vpop.f32.mrf.mxu0
    %v248 = vadd.f32 %v153, %v247
    %v249 = vpop.f32.mrf.mxu0
    %v250 = vadd.f32 %v153, %v249
    %251 = vmatmul.bf16.gmra.mxu0 %v127
    %v252 = vpop.f32.mrf.mxu0
    %v253 = vadd.f32 %v153, %v252
    %v254 = vpop.f32.mrf.mxu0
    %v255 = vadd.f32 %v153, %v254
    %256 = vmatmul.bf16.gmra.mxu0 %v128
    %v257 = vpop.f32.mrf.mxu0
    %v258 = vadd.f32 %v153, %v257
    %v259 = vpop.f32.mrf.mxu0
    %v260 = vadd.f32 %v153, %v259
    %261 = vmatmul.bf16.gmra.mxu0 %v129
    %v262 = vpop.f32.mrf.mxu0
    %v263 = vadd.f32 %v153, %v262
    %v264 = vpop.f32.mrf.mxu0
    %v265 = vadd.f32 %v153, %v264
    %266 = vmatmul.bf16.gmra.mxu0 %v130
    %v267 = vpop.f32.mrf.mxu0
    %v268 = vadd.f32 %v153, %v267
    %v269 = vpop.f32.mrf.mxu0
    %v270 = vadd.f32 %v153, %v269
    %271 = vmatmul.bf16.gmra.mxu0 %v131
    %v272 = vpop.f32.mrf.mxu0
    %v273 = vadd.f32 %v153, %v272
    %v274 = vpop.f32.mrf.mxu0
    %v275 = vadd.f32 %v153, %v274
    %276 = vmatmul.bf16.gmra.mxu0 %v132
    %v277 = vpop.f32.mrf.mxu0
    %v278 = vadd.f32 %v153, %v277
    %v279 = vpop.f32.mrf.mxu0
    %v280 = vadd.f32 %v153, %v279
    %281 = vmatmul.bf16.gmra.mxu0 %v133
    %v282 = vpop.f32.mrf.mxu0
    %v283 = vadd.f32 %v153, %v282
    %v284 = vpop.f32.mrf.mxu0
    %v285 = vadd.f32 %v153, %v284
    %286 = vmatmul.bf16.gmra.mxu0 %v134
    %v287 = vpop.f32.mrf.mxu0
    %v288 = vadd.f32 %v153, %v287
    %v289 = vpop.f32.mrf.mxu0
    %v290 = vadd.f32 %v153, %v289
    %291 = vdwg.mxu0
    %v292 = vmax.f32 %v213, 0.0
    %v293 = vmax.f32 %v215, 0.0
    %v294 = vmax.f32 %v218, 0.0
    %v295 = vmax.f32 %v220, 0.0
    %v296 = vmax.f32 %v223, 0.0
    %v297 = vmax.f32 %v225, 0.0
    %v298 = vmax.f32 %v228, 0.0
    %v299 = vmax.f32 %v230, 0.0
    %v300 = vmax.f32 %v233, 0.0
    %v301 = vmax.f32 %v235, 0.0
    %v302 = vmax.f32 %v238, 0.0
    %v303 = vmax.f32 %v240, 0.0
    %v304 = vmax.f32 %v243, 0.0
    %v305 = vmax.f32 %v245, 0.0
    %v306 = vmax.f32 %v248, 0.0
    %v307 = vmax.f32 %v250, 0.0
    %v308 = vmax.f32 %v253, 0.0
    %v309 = vmax.f32 %v255, 0.0
    %v310 = vmax.f32 %v258, 0.0
    %v311 = vmax.f32 %v260, 0.0
    %v312 = vmax.f32 %v263, 0.0
    %v313 = vmax.f32 %v265, 0.0
    %v314 = vmax.f32 %v268, 0.0
    %v315 = vmax.f32 %v270, 0.0
    %v316 = vmax.f32 %v273, 0.0
    %v317 = vmax.f32 %v275, 0.0
    %v318 = vmax.f32 %v278, 0.0
    %v319 = vmax.f32 %v280, 0.0
    %v320 = vmax.f32 %v283, 0.0
    %v321 = vmax.f32 %v285, 0.0
    %v322 = vmax.f32 %v288, 0.0
    %v323 = vmax.f32 %v290, 0.0
    %v324 = vpack.c.bf16 %v293, %v292
    %v325 = vpack.c.bf16 %v295, %v294
    %v326 = vpack.c.bf16 %v297, %v296
    %v327 = vpack.c.bf16 %v299, %v298
    %v328 = vpack.c.bf16 %v301, %v300
    %v329 = vpack.c.bf16 %v303, %v302
    %v330 = vpack.c.bf16 %v305, %v304
    %v331 = vpack.c.bf16 %v307, %v306
    %v332 = vpack.c.bf16 %v309, %v308
    %v333 = vpack.c.bf16 %v311, %v310
    %v334 = vpack.c.bf16 %v313, %v312
    %v335 = vpack.c.bf16 %v315, %v314
    %v336 = vpack.c.bf16 %v317, %v316
    %v337 = vpack.c.bf16 %v319, %v318
    %v338 = vpack.c.bf16 %v321, %v320
    %v339 = vpack.c.bf16 %v323, %v322
    %v340 = vld [vmem:[#allocation7] sm:$0xf]
    %v341 = vld [vmem:[#allocation7 + $0x4] sm:$0xf]
    %v342 = vld [vmem:[#allocation7 + $0x8] sm:$0xf]
    %v343 = vld [vmem:[#allocation7 + $0xc] sm:$0xf]
    %v344 = vld [vmem:[#allocation7 + $0x10] sm:$0xf]
    %v345 = vld [vmem:[#allocation7 + $0x14] sm:$0xf]
    %v346 = vld [vmem:[#allocation7 + $0x18] sm:$0xf]
    %v347 = vld [vmem:[#allocation7 + $0x1c] sm:$0xf]
    %v348 = vld [vmem:[#allocation7 + $0x20] sm:$0xf]
    %v349 = vld [vmem:[#allocation7 + $0x24] sm:$0xf]
    %v350 = vld [vmem:[#allocation7 + $0x28] sm:$0xf]
    %v351 = vld [vmem:[#allocation7 + $0x2c] sm:$0xf]
    %v352 = vld [vmem:[#allocation7 + $0x30] sm:$0xf]
    %v353 = vld [vmem:[#allocation7 + $0x34] sm:$0xf]
    %v354 = vld [vmem:[#allocation7 + $0x38] sm:$0xf]
    %v355 = vld [vmem:[#allocation7 + $0x3c] sm:$0xf]
    %v356 = vld [vmem:[%s4] sm:$0x1]
    %v358 = vperm.slane %v356, 0
    %v376 = vunpack.c.l.b16 %v340
    %v377 = vunpack.c.l.b16 %v341
    %v378 = vunpack.c.l.b16 %v342
    %v379 = vunpack.c.l.b16 %v343
    %v380 = vunpack.c.l.b16 %v344
    %v381 = vunpack.c.l.b16 %v345
    %v382 = vunpack.c.l.b16 %v346
    %v383 = vunpack.c.l.b16 %v347
    %v384 = vunpack.c.l.b16 %v348
    %v385 = vunpack.c.l.b16 %v349
    %v386 = vunpack.c.l.b16 %v350
    %v387 = vunpack.c.l.b16 %v351
    %v388 = vunpack.c.l.b16 %v352
    %v389 = vunpack.c.l.b16 %v353
    %v390 = vunpack.c.l.b16 %v354
    %v391 = vunpack.c.l.b16 %v355
    %v392 = vpack.c.b16 %v377, %v376
    %v393 = vpack.c.b16 %v379, %v378
    %v394 = vpack.c.b16 %v381, %v380
    %v395 = vpack.c.b16 %v383, %v382
    %v396 = vpack.c.b16 %v385, %v384
    %v397 = vpack.c.b16 %v387, %v386
    %v398 = vpack.c.b16 %v389, %v388
    %v399 = vpack.c.b16 %v391, %v390
    %408 = vmatpush.bf16.msra.mxu0 %v399
    %409 = vmatpush.bf16.msra.mxu0 %v398
    %410 = vmatpush.bf16.msra.mxu0 %v397
    %411 = vmatpush.bf16.msra.mxu0 %v396
    %412 = vmatpush.bf16.msra.mxu0 %v395
    %413 = vmatpush.bf16.msra.mxu0 %v394
    %414 = vmatpush.bf16.msra.mxu0 %v393
    %415 = vmatpush.bf16.msra.mxu0 %v392
    %416 = vmatmul.bf16.gmra.mxu0 %v324
    %v417 = vpop.f32.mrf.mxu0
    %v418 = vadd.f32 %v358, %v417
    %v419 = vpop.f32.mrf.mxu0
    %v420 = vadd.f32 %v358, %v419
    %421 = vmatmul.bf16.gmra.mxu0 %v325
    %v422 = vpop.f32.mrf.mxu0
    %v423 = vadd.f32 %v358, %v422
    %v424 = vpop.f32.mrf.mxu0
    %v425 = vadd.f32 %v358, %v424
    %426 = vmatmul.bf16.gmra.mxu0 %v326
    %v427 = vpop.f32.mrf.mxu0
    %v428 = vadd.f32 %v358, %v427
    %v429 = vpop.f32.mrf.mxu0
    %v430 = vadd.f32 %v358, %v429
    %431 = vmatmul.bf16.gmra.mxu0 %v327
    %v432 = vpop.f32.mrf.mxu0
    %v433 = vadd.f32 %v358, %v432
    %v434 = vpop.f32.mrf.mxu0
    %v435 = vadd.f32 %v358, %v434
    %436 = vmatmul.bf16.gmra.mxu0 %v328
    %v437 = vpop.f32.mrf.mxu0
    %v438 = vadd.f32 %v358, %v437
    %v439 = vpop.f32.mrf.mxu0
    %v440 = vadd.f32 %v358, %v439
    %441 = vmatmul.bf16.gmra.mxu0 %v329
    %v442 = vpop.f32.mrf.mxu0
    %v443 = vadd.f32 %v358, %v442
    %v444 = vpop.f32.mrf.mxu0
    %v445 = vadd.f32 %v358, %v444
    %446 = vmatmul.bf16.gmra.mxu0 %v330
    %v447 = vpop.f32.mrf.mxu0
    %v448 = vadd.f32 %v358, %v447
    %v449 = vpop.f32.mrf.mxu0
    %v450 = vadd.f32 %v358, %v449
    %451 = vmatmul.bf16.gmra.mxu0 %v331
    %v452 = vpop.f32.mrf.mxu0
    %v453 = vadd.f32 %v358, %v452
    %v454 = vpop.f32.mrf.mxu0
    %v455 = vadd.f32 %v358, %v454
    %456 = vmatmul.bf16.gmra.mxu0 %v332
    %v457 = vpop.f32.mrf.mxu0
    %v458 = vadd.f32 %v358, %v457
    %v459 = vpop.f32.mrf.mxu0
    %v460 = vadd.f32 %v358, %v459
    %461 = vmatmul.bf16.gmra.mxu0 %v333
    %v462 = vpop.f32.mrf.mxu0
    %v463 = vadd.f32 %v358, %v462
    %v464 = vpop.f32.mrf.mxu0
    %v465 = vadd.f32 %v358, %v464
    %466 = vmatmul.bf16.gmra.mxu0 %v334
    %v467 = vpop.f32.mrf.mxu0
    %v468 = vadd.f32 %v358, %v467
    %v469 = vpop.f32.mrf.mxu0
    %v470 = vadd.f32 %v358, %v469
    %471 = vmatmul.bf16.gmra.mxu0 %v335
    %v472 = vpop.f32.mrf.mxu0
    %v473 = vadd.f32 %v358, %v472
    %v474 = vpop.f32.mrf.mxu0
    %v475 = vadd.f32 %v358, %v474
    %476 = vmatmul.bf16.gmra.mxu0 %v336
    %v477 = vpop.f32.mrf.mxu0
    %v478 = vadd.f32 %v358, %v477
    %v479 = vpop.f32.mrf.mxu0
    %v480 = vadd.f32 %v358, %v479
    %481 = vmatmul.bf16.gmra.mxu0 %v337
    %v482 = vpop.f32.mrf.mxu0
    %v483 = vadd.f32 %v358, %v482
    %v484 = vpop.f32.mrf.mxu0
    %v485 = vadd.f32 %v358, %v484
    %486 = vmatmul.bf16.gmra.mxu0 %v338
    %v487 = vpop.f32.mrf.mxu0
    %v488 = vadd.f32 %v358, %v487
    %v489 = vpop.f32.mrf.mxu0
    %v490 = vadd.f32 %v358, %v489
    %491 = vmatmul.bf16.gmra.mxu0 %v339
    %v492 = vpop.f32.mrf.mxu0
    %v493 = vadd.f32 %v358, %v492
    %v494 = vpop.f32.mrf.mxu0
    %v495 = vadd.f32 %v358, %v494
    %496 = vdwg.mxu0
    %529 = vrot.lane.b32.xlu0 %v418, 64
    %v530 = vpop.permute.xlu0 %529
    %531 = vrot.lane.b32.xlu0 %v420, 64
    %v532 = vpop.permute.xlu0 %531
    %533 = vrot.lane.b32.xlu0 %v423, 64
    %v534 = vpop.permute.xlu0 %533
    %535 = vrot.lane.b32.xlu0 %v425, 64
    %v536 = vpop.permute.xlu0 %535
    %537 = vrot.lane.b32.xlu0 %v428, 64
    %v538 = vpop.permute.xlu0 %537
    %539 = vrot.lane.b32.xlu0 %v430, 64
    %v540 = vpop.permute.xlu0 %539
    %541 = vrot.lane.b32.xlu0 %v433, 64
    %v542 = vpop.permute.xlu0 %541
    %543 = vrot.lane.b32.xlu0 %v435, 64
    %v544 = vpop.permute.xlu0 %543
    %545 = vrot.lane.b32.xlu0 %v438, 64
    %v546 = vpop.permute.xlu0 %545
    %547 = vrot.lane.b32.xlu0 %v440, 64
    %v548 = vpop.permute.xlu0 %547
    %549 = vrot.lane.b32.xlu0 %v443, 64
    %v550 = vpop.permute.xlu0 %549
    %551 = vrot.lane.b32.xlu0 %v445, 64
    %v552 = vpop.permute.xlu0 %551
    %553 = vrot.lane.b32.xlu0 %v448, 64
    %v554 = vpop.permute.xlu0 %553
    %555 = vrot.lane.b32.xlu0 %v450, 64
    %v556 = vpop.permute.xlu0 %555
    %557 = vrot.lane.b32.xlu0 %v453, 64
    %v558 = vpop.permute.xlu0 %557
    %559 = vrot.lane.b32.xlu0 %v455, 64
    %v560 = vpop.permute.xlu0 %559
    %561 = vrot.lane.b32.xlu0 %v458, 64
    %v562 = vpop.permute.xlu0 %561
    %563 = vrot.lane.b32.xlu0 %v460, 64
    %v564 = vpop.permute.xlu0 %563
    %565 = vrot.lane.b32.xlu0 %v463, 64
    %v566 = vpop.permute.xlu0 %565
    %567 = vrot.lane.b32.xlu0 %v465, 64
    %v568 = vpop.permute.xlu0 %567
    %569 = vrot.lane.b32.xlu0 %v468, 64
    %v570 = vpop.permute.xlu0 %569
    %571 = vrot.lane.b32.xlu0 %v470, 64
    %v572 = vpop.permute.xlu0 %571
    %573 = vrot.lane.b32.xlu0 %v473, 64
    %v574 = vpop.permute.xlu0 %573
    %575 = vrot.lane.b32.xlu0 %v475, 64
    %v576 = vpop.permute.xlu0 %575
    %577 = vrot.lane.b32.xlu0 %v478, 64
    %v578 = vpop.permute.xlu0 %577
    %579 = vrot.lane.b32.xlu0 %v480, 64
    %v580 = vpop.permute.xlu0 %579
    %581 = vrot.lane.b32.xlu0 %v483, 64
    %v582 = vpop.permute.xlu0 %581
    %583 = vrot.lane.b32.xlu0 %v485, 64
    %v584 = vpop.permute.xlu0 %583
    %585 = vrot.lane.b32.xlu0 %v488, 64
    %v586 = vpop.permute.xlu0 %585
    %587 = vrot.lane.b32.xlu0 %v490, 64
    %v588 = vpop.permute.xlu0 %587
    %589 = vrot.lane.b32.xlu0 %v493, 64
    %v590 = vpop.permute.xlu0 %589
    %591 = vrot.lane.b32.xlu0 %v495, 64
    %v592 = vpop.permute.xlu0 %591
    %v625 = vld [vmem:[#allocation8] sm:$0xf]
    %v626 = vld [vmem:[#allocation8 + $0x4] sm:$0xf]
    %v627 = vld [vmem:[#allocation8 + $0x8] sm:$0xf]
    %v628 = vld [vmem:[#allocation8 + $0xc] sm:$0xf]
    %v629 = vld [vmem:[#allocation8 + $0x10] sm:$0xf]
    %v630 = vld [vmem:[#allocation8 + $0x14] sm:$0xf]
    %v631 = vld [vmem:[#allocation8 + $0x18] sm:$0xf]
    %v632 = vld [vmem:[#allocation8 + $0x1c] sm:$0xf]
    %v633 = vld [vmem:[#allocation8 + $0x20] sm:$0xf]
    %v634 = vld [vmem:[#allocation8 + $0x24] sm:$0xf]
    %v635 = vld [vmem:[#allocation8 + $0x28] sm:$0xf]
    %v636 = vld [vmem:[#allocation8 + $0x2c] sm:$0xf]
    %v637 = vld [vmem:[#allocation8 + $0x30] sm:$0xf]
    %v638 = vld [vmem:[#allocation8 + $0x34] sm:$0xf]
    %v639 = vld [vmem:[#allocation8 + $0x38] sm:$0xf]
    %v640 = vld [vmem:[#allocation8 + $0x3c] sm:$0xf]
    %v641 = vld [vmem:[#allocation8 + $0x40] sm:$0xf]
    %v642 = vld [vmem:[#allocation8 + $0x44] sm:$0xf]
    %v643 = vld [vmem:[#allocation8 + $0x48] sm:$0xf]
    %v644 = vld [vmem:[#allocation8 + $0x4c] sm:$0xf]
    %v645 = vld [vmem:[#allocation8 + $0x50] sm:$0xf]
    %v646 = vld [vmem:[#allocation8 + $0x54] sm:$0xf]
    %v647 = vld [vmem:[#allocation8 + $0x58] sm:$0xf]
    %v648 = vld [vmem:[#allocation8 + $0x5c] sm:$0xf]
    %v649 = vld [vmem:[#allocation8 + $0x60] sm:$0xf]
    %v650 = vld [vmem:[#allocation8 + $0x64] sm:$0xf]
    %v651 = vld [vmem:[#allocation8 + $0x68] sm:$0xf]
    %v652 = vld [vmem:[#allocation8 + $0x6c] sm:$0xf]
    %v653 = vld [vmem:[#allocation8 + $0x70] sm:$0xf]
    %v654 = vld [vmem:[#allocation8 + $0x74] sm:$0xf]
    %v655 = vld [vmem:[#allocation8 + $0x78] sm:$0xf]
    %v656 = vld [vmem:[#allocation8 + $0x7c] sm:$0xf]
    %v657 = vunpack.c.l.bf16 %v625
    %v658 = vunpack.c.l.bf16 %v626
    %v659 = vunpack.c.l.bf16 %v627
    %v660 = vunpack.c.l.bf16 %v628
    %v661 = vunpack.c.l.bf16 %v629
    %v662 = vunpack.c.l.bf16 %v630
    %v663 = vunpack.c.l.bf16 %v631
    %v664 = vunpack.c.l.bf16 %v632
    %v665 = vunpack.c.l.bf16 %v633
    %v666 = vunpack.c.l.bf16 %v634
    %v667 = vunpack.c.l.bf16 %v635
    %v668 = vunpack.c.l.bf16 %v636
    %v669 = vunpack.c.l.bf16 %v637
    %v670 = vunpack.c.l.bf16 %v638
    %v671 = vunpack.c.l.bf16 %v639
    %v672 = vunpack.c.l.bf16 %v640
    %v673 = vunpack.c.l.bf16 %v641
    %v674 = vunpack.c.l.bf16 %v642
    %v675 = vunpack.c.l.bf16 %v643
    %v676 = vunpack.c.l.bf16 %v644
    %v677 = vunpack.c.l.bf16 %v645
    %v678 = vunpack.c.l.bf16 %v646
    %v679 = vunpack.c.l.bf16 %v647
    %v680 = vunpack.c.l.bf16 %v648
    %v681 = vunpack.c.l.bf16 %v649
    %v682 = vunpack.c.l.bf16 %v650
    %v683 = vunpack.c.l.bf16 %v651
    %v684 = vunpack.c.l.bf16 %v652
    %v685 = vunpack.c.l.bf16 %v653
    %v686 = vunpack.c.l.bf16 %v654
    %v687 = vunpack.c.l.bf16 %v655
    %v688 = vunpack.c.l.bf16 %v656
    %v689 = vmul.f32 %v530, 1.442695
    %v690 = vpow.pop %v689
    %v691 = vmul.f32 %v532, 1.442695
    %v692 = vpow.pop %v691
    %v693 = vmul.f32 %v534, 1.442695
    %v694 = vpow.pop %v693
    %v695 = vmul.f32 %v536, 1.442695
    %v696 = vpow.pop %v695
    %v697 = vmul.f32 %v538, 1.442695
    %v698 = vpow.pop %v697
    %v699 = vmul.f32 %v540, 1.442695
    %v700 = vpow.pop %v699
    %v701 = vmul.f32 %v542, 1.442695
    %v702 = vpow.pop %v701
    %v703 = vmul.f32 %v544, 1.442695
    %v704 = vpow.pop %v703
    %v705 = vmul.f32 %v546, 1.442695
    %v706 = vpow.pop %v705
    %v707 = vmul.f32 %v548, 1.442695
    %v708 = vpow.pop %v707
    %v709 = vmul.f32 %v550, 1.442695
    %v710 = vpow.pop %v709
    %v711 = vmul.f32 %v552, 1.442695
    %v712 = vpow.pop %v711
    %v713 = vmul.f32 %v554, 1.442695
    %v714 = vpow.pop %v713
    %v715 = vmul.f32 %v556, 1.442695
    %v716 = vpow.pop %v715
    %v717 = vmul.f32 %v558, 1.442695
    %v718 = vpow.pop %v717
    %v719 = vmul.f32 %v560, 1.442695
    %v720 = vpow.pop %v719
    %v721 = vmul.f32 %v562, 1.442695
    %v722 = vpow.pop %v721
    %v723 = vmul.f32 %v564, 1.442695
    %v724 = vpow.pop %v723
    %v725 = vmul.f32 %v566, 1.442695
    %v726 = vpow.pop %v725
    %v727 = vmul.f32 %v568, 1.442695
    %v728 = vpow.pop %v727
    %v729 = vmul.f32 %v570, 1.442695
    %v730 = vpow.pop %v729
    %v731 = vmul.f32 %v572, 1.442695
    %v732 = vpow.pop %v731
    %v733 = vmul.f32 %v574, 1.442695
    %v734 = vpow.pop %v733
    %v735 = vmul.f32 %v576, 1.442695
    %v736 = vpow.pop %v735
    %v737 = vmul.f32 %v578, 1.442695
    %v738 = vpow.pop %v737
    %v739 = vmul.f32 %v580, 1.442695
    %v740 = vpow.pop %v739
    %v741 = vmul.f32 %v582, 1.442695
    %v742 = vpow.pop %v741
    %v743 = vmul.f32 %v584, 1.442695
    %v744 = vpow.pop %v743
    %v745 = vmul.f32 %v586, 1.442695
    %v746 = vpow.pop %v745
    %v747 = vmul.f32 %v588, 1.442695
    %v748 = vpow.pop %v747
    %v749 = vmul.f32 %v590, 1.442695
    %v750 = vpow.pop %v749
    %v751 = vmul.f32 %v592, 1.442695
    %v752 = vpow.pop %v751
    %v753 = vmul.f32 %v690, %v657
    %v754 = vmul.f32 %v692, %v658
    %v755 = vmul.f32 %v694, %v659
    %v756 = vmul.f32 %v696, %v660
    %v757 = vmul.f32 %v698, %v661
    %v758 = vmul.f32 %v700, %v662
    %v759 = vmul.f32 %v702, %v663
    %v760 = vmul.f32 %v704, %v664
    %v761 = vmul.f32 %v706, %v665
    %v762 = vmul.f32 %v708, %v666
    %v763 = vmul.f32 %v710, %v667
    %v764 = vmul.f32 %v712, %v668
    %v765 = vmul.f32 %v714, %v669
    %v766 = vmul.f32 %v716, %v670
    %v767 = vmul.f32 %v718, %v671
    %v768 = vmul.f32 %v720, %v672
    %v769 = vmul.f32 %v722, %v673
    %v770 = vmul.f32 %v724, %v674
    %v771 = vmul.f32 %v726, %v675
    %v772 = vmul.f32 %v728, %v676
    %v773 = vmul.f32 %v730, %v677
    %v774 = vmul.f32 %v732, %v678
    %v775 = vmul.f32 %v734, %v679
    %v776 = vmul.f32 %v736, %v680
    %v777 = vmul.f32 %v738, %v681
    %v778 = vmul.f32 %v740, %v682
    %v779 = vmul.f32 %v742, %v683
    %v780 = vmul.f32 %v744, %v684
    %v781 = vmul.f32 %v746, %v685
    %v782 = vmul.f32 %v748, %v686
    %v783 = vmul.f32 %v750, %v687
    %v784 = vmul.f32 %v752, %v688
    %v785 = vadd.f32 %v418, %v753
    %v786 = vadd.f32 %v420, %v754
    %v787 = vadd.f32 %v423, %v755
    %v788 = vadd.f32 %v425, %v756
    %v789 = vadd.f32 %v428, %v757
    %v790 = vadd.f32 %v430, %v758
    %v791 = vadd.f32 %v433, %v759
    %v792 = vadd.f32 %v435, %v760
    %v793 = vadd.f32 %v438, %v761
    %v794 = vadd.f32 %v440, %v762
    %v795 = vadd.f32 %v443, %v763
    %v796 = vadd.f32 %v445, %v764
    %v797 = vadd.f32 %v448, %v765
    %v798 = vadd.f32 %v450, %v766
    %v799 = vadd.f32 %v453, %v767
    %v800 = vadd.f32 %v455, %v768
    %v801 = vadd.f32 %v458, %v769
    %v802 = vadd.f32 %v460, %v770
    %v803 = vadd.f32 %v463, %v771
    %v804 = vadd.f32 %v465, %v772
    %v805 = vadd.f32 %v468, %v773
    %v806 = vadd.f32 %v470, %v774
    %v807 = vadd.f32 %v473, %v775
    %v808 = vadd.f32 %v475, %v776
    %v809 = vadd.f32 %v478, %v777
    %v810 = vadd.f32 %v480, %v778
    %v811 = vadd.f32 %v483, %v779
    %v812 = vadd.f32 %v485, %v780
    %v813 = vadd.f32 %v488, %v781
    %v814 = vadd.f32 %v490, %v782
    %v815 = vadd.f32 %v493, %v783
    %v816 = vadd.f32 %v495, %v784
    %817 = vst [vmem:[#allocation10] sm:$0xff] %v785
    %818 = vst [vmem:[#allocation10 + $0x8] sm:$0xff] %v786
    %819 = vst [vmem:[#allocation10 + $0x10] sm:$0xff] %v787
    %820 = vst [vmem:[#allocation10 + $0x18] sm:$0xff] %v788
    %821 = vst [vmem:[#allocation10 + $0x20] sm:$0xff] %v789
    %822 = vst [vmem:[#allocation10 + $0x28] sm:$0xff] %v790
    %823 = vst [vmem:[#allocation10 + $0x30] sm:$0xff] %v791
    %824 = vst [vmem:[#allocation10 + $0x38] sm:$0xff] %v792
    %825 = vst [vmem:[#allocation10 + $0x40] sm:$0xff] %v793
    %826 = vst [vmem:[#allocation10 + $0x48] sm:$0xff] %v794
    %827 = vst [vmem:[#allocation10 + $0x50] sm:$0xff] %v795
    %828 = vst [vmem:[#allocation10 + $0x58] sm:$0xff] %v796
    %829 = vst [vmem:[#allocation10 + $0x60] sm:$0xff] %v797
    %830 = vst [vmem:[#allocation10 + $0x68] sm:$0xff] %v798
    %831 = vst [vmem:[#allocation10 + $0x70] sm:$0xff] %v799
    %832 = vst [vmem:[#allocation10 + $0x78] sm:$0xff] %v800
    %833 = vst [vmem:[#allocation10 + $0x80] sm:$0xff] %v801
    %834 = vst [vmem:[#allocation10 + $0x88] sm:$0xff] %v802
    %835 = vst [vmem:[#allocation10 + $0x90] sm:$0xff] %v803
    %836 = vst [vmem:[#allocation10 + $0x98] sm:$0xff] %v804
    %837 = vst [vmem:[#allocation10 + $0xa0] sm:$0xff] %v805
    %838 = vst [vmem:[#allocation10 + $0xa8] sm:$0xff] %v806
    %839 = vst [vmem:[#allocation10 + $0xb0] sm:$0xff] %v807
    %840 = vst [vmem:[#allocation10 + $0xb8] sm:$0xff] %v808
    %841 = vst [vmem:[#allocation10 + $0xc0] sm:$0xff] %v809
    %842 = vst [vmem:[#allocation10 + $0xc8] sm:$0xff] %v810
    %843 = vst [vmem:[#allocation10 + $0xd0] sm:$0xff] %v811
    %844 = vst [vmem:[#allocation10 + $0xd8] sm:$0xff] %v812
    %845 = vst [vmem:[#allocation10 + $0xe0] sm:$0xff] %v813
    %846 = vst [vmem:[#allocation10 + $0xe8] sm:$0xff] %v814
    %847 = vst [vmem:[#allocation10 + $0xf0] sm:$0xff] %v815
    %848 = vst [vmem:[#allocation10 + $0xf8] sm:$0xff] %v816
    // Predicated region
    $region42: #{tpu_custom_call.1} parent=1 // pred_check
      _
    $region43: #{tpu_custom_call.1} parent=1 // pred_check_branch
      %850 = sbr.rel (0) target = $region45
    $region44: #{tpu_custom_call.1} parent=1 // pred_region
      %852 = vsyncadd [#allocation4], 0
      %s853 = sshll.u32 [#allocation10], 4
      %s854 = int_to_ptr.vmem [resolvable:$true] %s853
      %s855 = sshll.u32 %s6, 4
      %s856 = int_to_ptr.hbm [resolvable:$true] %s855
      %861 = dma.vmem_to_hbm [thread:$0]  %s854, 4096, %s856, [#allocation4], 128, 128, 8
    $region45: #{tpu_custom_call.1} parent=1 // pred_fallthru
      _
    // Predicated region
    $region46: #{tpu_custom_call.1} parent=1 // pred_check
      _
    $region47: #{tpu_custom_call.1} parent=1 // pred_check_branch
      %863 = sbr.rel (0) target = $region49
    $region48: #{tpu_custom_call.1} parent=1 // pred_region
      %865 = dma.done [#allocation4], 4096
    $region49: #{tpu_custom_call.1} parent=1 // pred_fallthru
      _
    %866 = vsyncpa [#allocation3], 1
    %867 = vsyncpa [#allocation6], 1
    %868 = vsyncpa [#allocation9], 1
    %869 = vsyncpa [#allocation4], 1

</llo_original>
